<compile_context>
chip_gen: v7x
topology: tpu7x:2x2x1
jax: 0.10.0
libtpu: 0.0.40
codegen_flags: <defaults>
</compile_context>

<pallas_src>
import functools
import math

import jax
import jax.numpy as jnp
from jax.experimental import pallas as pl
from jax.experimental.pallas import tpu as pltpu


_LANE = 512           # lane-dense last dim (multiple of 128) -> unmasked vector ld/st
_MAX_TILE_ROWS = 256  # (256, 512) f32 = 512 KiB per input block
_NUM_CHUNKS = 2       # leading 'parallel' grid axis -> both TensorCores on v7x


def _round_up(a, b):
    return -(-a // b) * b


# --------------------------------------------------------------------------
# Wrapper-side layout plumbing: flatten (+concat) -> pad -> (rows, _LANE) slab
# --------------------------------------------------------------------------
def _prep(flat_list, pad_value):
    """Concat 1-D f32 arrays and pad into a lane-dense, tile/chunk-aligned slab.

    Returns (arr2d, tile_rows, steps_per_chunk, pad_count).
    """
    flat = flat_list[0] if len(flat_list) == 1 else jnp.concatenate(flat_list)
    n = flat.size
    rows = max(1, _round_up(n, _LANE) // _LANE)
    tile_rows = min(_MAX_TILE_ROWS, _round_up(rows, 8))          # sublane multiple
    padded_rows = _round_up(rows, tile_rows * _NUM_CHUNKS)
    padded_n = padded_rows * _LANE
    if padded_n > n:
        flat = jnp.pad(flat, (0, padded_n - n), constant_values=pad_value)
    arr = flat.reshape(padded_rows, _LANE)
    steps = padded_rows // (tile_rows * _NUM_CHUNKS)
    return arr, tile_rows, steps, padded_n - n


def _prep_pair(x, y, pad_value):
    """Prep two same-sized arrays with identical tiling (single derivation)."""
    xa, tr, st, pad = _prep([jnp.ravel(x).astype(jnp.float32)], pad_value)
    ya, _, _, _ = _prep([jnp.ravel(y).astype(jnp.float32)], pad_value)
    return xa, ya, tr, st, pad


# --------------------------------------------------------------------------
# Kernels: pure element-wise accumulation into a block-shaped VMEM-resident
# partial.  Output BlockSpec maps every inner-grid step to the same block per
# chunk -> accumulator stays resident in VMEM across the "arbitrary" axis.
# --------------------------------------------------------------------------
def _sum_log_kernel(x_ref, acc_ref):
    @pl.when(pl.program_id(1) == 0)
    def _():
        acc_ref[...] = jnp.zeros_like(acc_ref)

    acc_ref[...] = acc_ref[...] + jnp.log(x_ref[...])


def _sse_kernel(x_ref, y_ref, acc_ref):
    @pl.when(pl.program_id(1) == 0)
    def _():
        acc_ref[...] = jnp.zeros_like(acc_ref)

    d = x_ref[...] - y_ref[...]
    acc_ref[...] = acc_ref[...] + d * d


def _charbonnier_kernel(x_ref, y_ref, acc_ref, *, eps2):
    @pl.when(pl.program_id(1) == 0)
    def _():
        acc_ref[...] = jnp.zeros_like(acc_ref)

    d = x_ref[...] - y_ref[...]
    acc_ref[...] = acc_ref[...] + jnp.sqrt(d * d + eps2)


# --------------------------------------------------------------------------
# pallas_call wrapper shared by all three reductions
# --------------------------------------------------------------------------
def _reduce_call(kernel, arrays, tile_rows, steps):
    in_specs = [
        pl.BlockSpec((tile_rows, _LANE), lambda c, i: (c * steps + i, 0))
        for _ in arrays
    ]
    partial = pl.pallas_call(
        kernel,
        out_shape=jax.ShapeDtypeStruct((_NUM_CHUNKS * tile_rows, _LANE), jnp.float32),
        grid=(_NUM_CHUNKS, steps),
        in_specs=in_specs,
        out_specs=pl.BlockSpec((tile_rows, _LANE), lambda c, i: (c, 0)),
        compiler_params=pltpu.CompilerParams(
            dimension_semantics=("parallel", "arbitrary")
        ),
    )(*arrays)
    # Single cross-lane/sublane reduction, done once outside the kernel.
    return jnp.sum(partial, dtype=jnp.float32)


def pallas_sum_log(arrays):
    """sum(log(a)) fused over a list of arrays (one pallas_call total)."""
    flats = [jnp.ravel(a).astype(jnp.float32) for a in arrays]
    arr, tr, st, _ = _prep(flats, pad_value=1.0)           # log(1) == 0
    return _reduce_call(_sum_log_kernel, [arr], tr, st)


def pallas_sse(x, y):
    """sum((x - y)^2) over the whole array."""
    xa, ya, tr, st, _ = _prep_pair(x, y, 0.0)
    return _reduce_call(_sse_kernel, [xa, ya], tr, st)


def pallas_charbonnier_sum(x, y, eps=1e-6):
    """sum(sqrt((x - y)^2 + eps^2)) over the whole array."""
    xa, ya, tr, st, pad = _prep_pair(x, y, 0.0)
    kern = functools.partial(_charbonnier_kernel, eps2=float(eps) * float(eps))
    total = _reduce_call(kern, [xa, ya], tr, st)
    # Each padded (0, 0) pair contributed sqrt(eps^2) = eps; remove that.
    return total - jnp.float32(pad) * jnp.float32(eps)


# --------------------------------------------------------------------------
# RateDistortionLoss (forward only; no trainable parameters in this module)
# --------------------------------------------------------------------------
class RateDistortionLoss:
    """Rate-distortion loss with a Lagrangian parameter (Pallas-backed)."""

    def __init__(self, lmbda=0.01, metrics="mse", charbonnier_eps=1e-6):
        self.lmbda = lmbda
        self.metrics = metrics
        self.charbonnier_eps = charbonnier_eps

    def set_lmbda(self, lmbda):
        self.lmbda = lmbda

    def forward(self, output, target):
        N, _, H, W = target.shape
        num_pixels = N * H * W
        out = {}

        # bpp = sum_t sum(log(p_t)) / (-ln(2) * num_pixels); all likelihood
        # tensors are fused into a single reduction kernel.
        liks = list(output["likelihoods"].values())
        if liks:
            out["bpp_loss"] = pallas_sum_log(liks) / (-math.log(2) * num_pixels)
        else:
            out["bpp_loss"] = jnp.float32(0.0)

        if self.metrics == "mse":
            numel = output["x_hat"].size
            out["mse_loss"] = pallas_sse(output["x_hat"], target) / numel
            out["ms_ssim_loss"] = None
            out["loss"] = self.lmbda * 255 ** 2 * out["mse_loss"] + out["bpp_loss"]
        elif self.metrics == "ms-ssim":
            # TODO(synk): ms_ssim (gaussian-pyramid multi-scale SSIM) is not
            # reimplemented here; only 'mse' / 'charbonnier' are supported.
            raise NotImplementedError("ms-ssim metric not implemented in Pallas port")
        elif self.metrics == "charbonnier":
            numel = output["x_hat"].size
            out["mse_loss"] = (
                pallas_charbonnier_sum(output["x_hat"], target, self.charbonnier_eps)
                / numel
            )
            out["ms_ssim_loss"] = None
            out["loss"] = self.lmbda * 255 ** 2 * out["mse_loss"] + out["bpp_loss"]
        return out

    __call__ = forward


# --------------------------------------------------------------------------
# Pure-JAX references for verification
# --------------------------------------------------------------------------
def _reference_mse(output, target, lmbda):
    N, _, H, W = target.shape
    num_pixels = N * H * W
    bpp = sum(
        jnp.sum(jnp.log(l)) / (-math.log(2) * num_pixels)
        for l in output["likelihoods"].values()
    )
    mse = jnp.mean((output["x_hat"] - target) ** 2)
    return {"bpp_loss": bpp, "mse_loss": mse, "loss": lmbda * 255 ** 2 * mse + bpp}


def _reference_charbonnier(output, target, lmbda, eps=1e-6):
    N, _, H, W = target.shape
    num_pixels = N * H * W
    bpp = sum(
        jnp.sum(jnp.log(l)) / (-math.log(2) * num_pixels)
        for l in output["likelihoods"].values()
    )
    cb = jnp.mean(jnp.sqrt((output["x_hat"] - target) ** 2 + eps ** 2))
    return {"bpp_loss": bpp, "mse_loss": cb, "loss": lmbda * 255 ** 2 * cb + bpp}


if __name__ == "__main__":
    key = jax.random.PRNGKey(0)
    k1, k2, k3, k4 = jax.random.split(key, 4)

    # Small, deterministic synthetic inputs (NCHW).
    N, C, H, W = 2, 3, 16, 16
    target = jax.random.uniform(k1, (N, C, H, W), dtype=jnp.float32)
    x_hat = jnp.clip(
        target + 0.05 * jax.random.normal(k2, (N, C, H, W), dtype=jnp.float32),
        0.0,
        1.0,
    )
    # Likelihood tensors (values in (0, 1]) as produced by entropy models.
    lik_y = jax.random.uniform(
        k3, (N, 8, H // 4, W // 4), dtype=jnp.float32, minval=0.05, maxval=1.0
    )
    lik_z = jax.random.uniform(
        k4, (N, 4, H // 8, W // 8), dtype=jnp.float32, minval=0.05, maxval=1.0
    )

    output = {"x_hat": x_hat, "likelihoods": {"y": lik_y, "z": lik_z}}

    # --- mse branch ---
    criterion = RateDistortionLoss(lmbda=0.01, metrics="mse")
    res = criterion(output, target)
    jax.block_until_ready(res["loss"])

    ref = _reference_mse(output, target, lmbda=0.01)
    assert jnp.allclose(res["bpp_loss"], ref["bpp_loss"], rtol=1e-5, atol=1e-6)
    assert jnp.allclose(res["mse_loss"], ref["mse_loss"], rtol=1e-5, atol=1e-6)
    assert jnp.allclose(res["loss"], ref["loss"], rtol=1e-5, atol=1e-6)

    # --- charbonnier branch ---
    crit_cb = RateDistortionLoss(lmbda=0.01, metrics="charbonnier")
    res_cb = crit_cb(output, target)
    jax.block_until_ready(res_cb["loss"])

    ref_cb = _reference_charbonnier(output, target, lmbda=0.01, eps=1e-6)
    assert jnp.allclose(res_cb["mse_loss"], ref_cb["mse_loss"], rtol=1e-5, atol=1e-6)
    assert jnp.allclose(res_cb["loss"], ref_cb["loss"], rtol=1e-5, atol=1e-6)

    print("KERNEL_OK")
</pallas_src>

<mosaic_0001>
module attributes {stable_mosaic.version = 11 : i64} {
  func.func @_sum_log_kernel(%arg0: i32, %arg1: i32, %arg2: memref<8x512xf32, #tpu.memory_space<vmem>>, %arg3: memref<8x512xf32, #tpu.memory_space<vmem>>) attributes {dimension_semantics = [#tpu.dimension_semantics<parallel>, #tpu.dimension_semantics<arbitrary>], iteration_bounds = array<i64: 2, 1>, scalar_prefetch = 0 : i64, scratch_operands = 0 : i64, tpu.core_type = #tpu.core_type<tc>, window_params = [{transform_indices = @transform_0, window_bounds = array<i64: 8, 512>}, {transform_indices = @transform_1, window_bounds = array<i64: 8, 512>}]} {
    %c0_i32 = arith.constant 0 : i32
    %0 = arith.cmpi eq, %arg1, %c0_i32 : i32
    %1 = arith.extui %0 : i1 to i32
    %c0_i32_0 = arith.constant 0 : i32
    %2 = arith.cmpi ne, %1, %c0_i32_0 : i32
    scf.if %2 {
      %cst = arith.constant 0.000000e+00 : f32
      %8 = vector.broadcast %cst : f32 to vector<8x512xf32>
      %c0_6 = arith.constant 0 : index
      %c0_7 = arith.constant 0 : index
      %9 = vector.load %arg3[%c0_6, %c0_7] : memref<8x512xf32, #tpu.memory_space<vmem>>, vector<8x512xf32>
      tpu.vector_store %arg3[%c0_6, %c0_7], %8 {strides = array<i32>} : memref<8x512xf32, #tpu.memory_space<vmem>>, vector<8x512xf32>,
    } else {
    }
    %c0 = arith.constant 0 : index
    %c0_1 = arith.constant 0 : index
    %3 = vector.load %arg3[%c0, %c0_1] : memref<8x512xf32, #tpu.memory_space<vmem>>, vector<8x512xf32>
    %c0_2 = arith.constant 0 : index
    %c0_3 = arith.constant 0 : index
    %4 = vector.load %arg2[%c0_2, %c0_3] : memref<8x512xf32, #tpu.memory_space<vmem>>, vector<8x512xf32>
    %5 = math.log %4 : vector<8x512xf32>
    %6 = arith.addf %3, %5 : vector<8x512xf32>
    %c0_4 = arith.constant 0 : index
    %c0_5 = arith.constant 0 : index
    %7 = vector.load %arg3[%c0_4, %c0_5] : memref<8x512xf32, #tpu.memory_space<vmem>>, vector<8x512xf32>
    tpu.vector_store %arg3[%c0_4, %c0_5], %6 {strides = array<i32>} : memref<8x512xf32, #tpu.memory_space<vmem>>, vector<8x512xf32>,
    return
  }
  func.func @transform_0(%arg0: i32, %arg1: i32) -> (i32, i32) {
    %c1_i32 = arith.constant 1 : i32
    %0 = arith.muli %arg0, %c1_i32 : i32
    %1 = arith.addi %0, %arg1 : i32
    %c0_i32 = arith.constant 0 : i32
    %c0_i32_0 = arith.constant 0 : i32
    return %1, %c0_i32 : i32, i32
  }
  func.func @transform_1(%arg0: i32, %arg1: i32) -> (i32, i32) {
    %c0_i32 = arith.constant 0 : i32
    %c0_i32_0 = arith.constant 0 : i32
    return %arg0, %c0_i32 : i32, i32
  }
}

</mosaic_0001>

<llo_original>
// kernel: tpu_custom_call.1
$region0: #{tpu_custom_call.1}
  #allocation0 [shape = 'u32[]', space=smem, size = 0x4, offset = 0x4, fixed_abs, tag = 'smem constant byte address 0x4 - core index']
  #allocation1 [shape = 'u32[144,128]{1,0:T(1,128)}', space=vmem, size = 0x12000, scoped, tag = 'internal scratch']
  %s0 = inlined_call_operand.hbm [shape: f32[16,512], index: 0, kind: input, shape index: {}]
  %s1 = inlined_call_operand.hbm [shape: f32[16,512], index: 1, kind: output, shape index: {}]
  %s2 = sld [smem:[#allocation0]]
  $region45: #{tpu_custom_call.1} parent=0
    _
  %s4 = ssub.s32 1, %s2
  %s5 = scalar_select 0, %s4, %s2
  $region1: #{tpu_custom_call.1} parent=0
    #allocation2 [shape = 'u8[32768]{0}', space=vmem, size = 0x8000, scoped, tag = 'input window, operand 0']
    #allocation3 [shape = 's32[2]{0}', space=sflag, size = 0x8, scoped, tag = 'scoped memory for tpu_custom_call.1']
    #allocation4 [shape = 's32[2]{0}', space=sflag, size = 0x8, scoped, tag = 'scoped memory for tpu_custom_call.1']
    #allocation5 [shape = 'u8[32768]{0}', space=vmem, size = 0x8000, scoped, tag = 'output window, operand 0']
    %6 = vsyncpa [#allocation3], 0
    %s7 = scalar_lea.sflag [#allocation3], 1
    %8 = vsyncpa %s7, 0
    %9 = vsyncpa [#allocation4], 0
    %s10 = scalar_lea.sflag [#allocation4], 1
    %11 = vsyncpa %s10, 0
    loop: start=0, step=1, limit=4
    $region2: #{tpu_custom_call.1} parent=1 // loop_pre_header
      _
    $region3: #{tpu_custom_call.1} parent=1 // loop_header
      %s13 = sphi 0, %s17
      %p14 = scmp.ge.s32.totalorder %s13, 4
      %s20 = sphi 0, %s32
      %s21 = sphi 0, %s28
      %s22 = sphi 0, %s20
      %s23 = sphi 0, %s21
      %s24 = sphi 0, %s22
      %s25 = sphi 0, %s23
      %s37 = sphi 0, %s39
      %s40 = sphi 0, %s37
      %s41 = sphi 0, %s40
      %s57 = sphi 0, %s41
      %s63 = sphi 0, %s65
      %s66 = sphi 0, %s63
      %s67 = sphi 0, %s66
      %s83 = sphi 0, %s67
    $region4: #{tpu_custom_call.1} parent=1 // loop_header_branch
      %16 = sbr.rel (%p14) target = $region8
    $region5: #{tpu_custom_call.1} parent=1 // loop_body
      %s18 = ssub.s32 %s13, 1
      %s19 = ssub.s32 %s13, 2
      %s26 = sadd.s32 1, %s21
      %p27 = scmp.ge.s32.totalorder %s26, 1
      %s28 = scalar_select %p27, 0, %s26
      %s29 = sadd.s32 1, %s20
      %s30 = scalar_select %p27, %s29, %s20
      %p31 = scmp.ge.s32.totalorder %s30, 2
      %s32 = scalar_select %p31, 0, %s30
      %s33 = sadd.s32 %s20, %s21
      %s34 = sadd.s32 %s32, %s28
      %s35 = ssub.s32 %s33, %s34
      %p36 = scmp.eq.s32.totalorder %s35, 0
      %s38 = sadd.s32 %s37, 1
      %s39 = scalar_select %p36, %s37, %s38
      %p42 = pneg %p36
      %p43 = scmp.eq.s32.totalorder %s13, 1
      %p44 = por %p42, %p43
      %p45 = scmp.ne.s32.totalorder %s37, %s40
      %p46 = scmp.eq.s32.totalorder %s13, 0
      %p47 = por %p45, %p46
      %p48 = scmp.ne.s32.totalorder %s37, %s40
      %p49 = scmp.eq.s32.totalorder %s18, 1
      %p50 = por %p48, %p49
      %p51 = scmp.ne.s32.totalorder %s40, %s41
      %p52 = scmp.eq.s32.totalorder %s18, 0
      %p53 = por %p51, %p52
      %p54 = scmp.ne.s32.totalorder %s40, %s41
      %p55 = scmp.eq.s32.totalorder %s19, 1
      %p56 = por %p54, %p55
      %p58 = scmp.ne.s32.totalorder %s41, %s57
      %p59 = scmp.eq.s32.totalorder %s19, 0
      %p60 = por %p58, %p59
      %s61 = ssub.s32 %s20, %s32
      %p62 = scmp.eq.s32.totalorder %s61, 0
      %s64 = sadd.s32 %s63, 1
      %s65 = scalar_select %p62, %s63, %s64
      %p68 = pneg %p62
      %p69 = scmp.eq.s32.totalorder %s13, 1
      %p70 = por %p68, %p69
      %p71 = scmp.ne.s32.totalorder %s63, %s66
      %p72 = scmp.eq.s32.totalorder %s13, 0
      %p73 = por %p71, %p72
      %p74 = scmp.ne.s32.totalorder %s63, %s66
      %p75 = scmp.eq.s32.totalorder %s18, 1
      %p76 = por %p74, %p75
      %p77 = scmp.ne.s32.totalorder %s66, %s67
      %p78 = scmp.eq.s32.totalorder %s18, 0
      %p79 = por %p77, %p78
      %p80 = scmp.ne.s32.totalorder %s66, %s67
      %p81 = scmp.eq.s32.totalorder %s19, 1
      %p82 = por %p80, %p81
      %p84 = scmp.ne.s32.totalorder %s67, %s83
      %p85 = scmp.eq.s32.totalorder %s19, 0
      %p86 = por %p84, %p85
      %p87 = scmp.le.s32.totalorder 1, %s13
      %p88 = scmp.lt.s32.totalorder %s13, 3
      %p89 = pnand %p87, %p88
      %p90 = pneg %p89
      // Predicated region
      $region9: #{tpu_custom_call.1} parent=5 // pred_check
        _
      $region10: #{tpu_custom_call.1} parent=5 // pred_check_branch
        %92 = sbr.rel (%p89) target = $region12
      $region11: #{tpu_custom_call.1} parent=5 // pred_region
        %s93 = ssub.s32 %s13, 1
      $region12: #{tpu_custom_call.1} parent=5 // pred_fallthru
        _
      %p94 = scmp.lt.s32.totalorder %s13, 2
      // Predicated region
      $region13: #{tpu_custom_call.1} parent=5 // pred_check
        %p95 = pneg %p94
      $region14: #{tpu_custom_call.1} parent=5 // pred_check_branch
        %97 = sbr.rel (%p95) target = $region16
      $region15: #{tpu_custom_call.1} parent=5 // pred_region
        // Predicated region
        $region17: #{tpu_custom_call.1} parent=15 // pred_check
          %p98 = pneg %p47
        $region18: #{tpu_custom_call.1} parent=15 // pred_check_branch
          %100 = sbr.rel (%p98) target = $region20
        $region19: #{tpu_custom_call.1} parent=15 // pred_region
          %s101 = sand.u32 %s37, 1
          %s102 = scalar_lea.sflag [#allocation3], %s101
          %s103 = sand.u32 %s37, 1
          %s104 = smul.addr %s103, 32
          %s105 = scalar_lea.vmem [#allocation2], %s104
          %s106 = sadd.s32 %s20, %s21
          %s108 = ssub.s32 512, 512
          %109 = vsyncadd %s102, %s108
          %s110 = smul.addr %s106, 4
          %s111 = smul.addr %s110, 128
          %s112 = scalar_lea.hbm %s0, %s111
          %s114 = sshll.u32 %s105, 4
          %s115 = int_to_ptr.vmem [resolvable:$true] %s114
          %117 = dma.hbm_to_vmem [thread:$0]  %s112, 512, %s115, %s102
        $region20: #{tpu_custom_call.1} parent=15 // pred_fallthru
          _
      $region16: #{tpu_custom_call.1} parent=5 // pred_fallthru
        _
      %p118 = scmp.le.s32.totalorder 1, %s13
      %p119 = scmp.lt.s32.totalorder %s13, 3
      %p120 = pnand %p118, %p119
      %p121 = pneg %p120
      // Predicated region
      $region21: #{tpu_custom_call.1} parent=5 // pred_check
        _
      $region22: #{tpu_custom_call.1} parent=5 // pred_check_branch
        %123 = sbr.rel (%p120) target = $region24
      $region23: #{tpu_custom_call.1} parent=5 // pred_region
        %s124 = ssub.s32 %s13, 1
        %s125 = sand.u32 %s40, 1
        %s126 = scalar_lea.sflag [#allocation3], %s125
        %s127 = sand.u32 %s40, 1
        %s128 = smul.addr %s127, 32
        %s129 = scalar_lea.vmem [#allocation2], %s128
        // Predicated region
        $region25: #{tpu_custom_call.1} parent=23 // pred_check
          %p130 = pneg %p53
        $region26: #{tpu_custom_call.1} parent=23 // pred_check_branch
          %132 = sbr.rel (%p130) target = $region28
        $region27: #{tpu_custom_call.1} parent=23 // pred_region
          %133 = dma.done %s126, 512
        $region28: #{tpu_custom_call.1} parent=23 // pred_fallthru
          _
        %s134 = sand.u32 %s40, 1
        %s135 = scalar_lea.sflag [#allocation3], %s134
        %s136 = sand.u32 %s40, 1
        %s137 = smul.addr %s136, 32
        %s138 = scalar_lea.vmem [#allocation2], %s137
        %p139 = pneg %p53
        %p140 = pneg %p50
        %p141 = pneg %p79
        %p142 = pneg %p76
        %s143 = sand.u32 %s66, 1
        %s144 = scalar_lea.sflag [#allocation4], %s143
        %s145 = sand.u32 %s66, 1
        %s146 = smul.addr %s145, 32
        %s147 = scalar_lea.vmem [#allocation5], %s146
        %s148 = sadd.s32 %s22, %s23
        %p149 = scmp.eq.s32.totalorder %s23, 0
        // Predicated region
        $region29: #{tpu_custom_call.1} parent=23 // pred_check
          %p150 = pneg %p149
        $region30: #{tpu_custom_call.1} parent=23 // pred_check_branch
          %152 = sbr.rel (%p150) target = $region32
        $region31: #{tpu_custom_call.1} parent=23 // pred_region
          %153 = vst [vmem:[%s147] sm:$0xff] 0.0
          %154 = vst [vmem:[%s147 + $0x8] sm:$0xff] 0.0
          %155 = vst [vmem:[%s147 + $0x10] sm:$0xff] 0.0
          %156 = vst [vmem:[%s147 + $0x18] sm:$0xff] 0.0
        $region32: #{tpu_custom_call.1} parent=23 // pred_fallthru
          _
        %v157 = vld [vmem:[%s147] sm:$0xff]
        %v158 = vld [vmem:[%s147 + $0x8] sm:$0xff]
        %v159 = vld [vmem:[%s147 + $0x10] sm:$0xff]
        %v160 = vld [vmem:[%s147 + $0x18] sm:$0xff]
        %v161 = vld [vmem:[%s129] sm:$0xff]
        %v162 = vld [vmem:[%s129 + $0x8] sm:$0xff]
        %v163 = vld [vmem:[%s129 + $0x10] sm:$0xff]
        %v164 = vld [vmem:[%s129 + $0x18] sm:$0xff]
        %v165 = vlog2.pop %v161
        %v166 = vmul.f32 %v165, 0.6931472
        %v167 = vlog2.pop %v162
        %v168 = vmul.f32 %v167, 0.6931472
        %v169 = vlog2.pop %v163
        %v170 = vmul.f32 %v169, 0.6931472
        %v171 = vlog2.pop %v164
        %v172 = vmul.f32 %v171, 0.6931472
        %v173 = vadd.f32 %v157, %v166
        %v174 = vadd.f32 %v158, %v168
        %v175 = vadd.f32 %v159, %v170
        %v176 = vadd.f32 %v160, %v172
        %177 = vst [vmem:[%s147] sm:$0xff] %v173
        %178 = vst [vmem:[%s147 + $0x8] sm:$0xff] %v174
        %179 = vst [vmem:[%s147 + $0x10] sm:$0xff] %v175
        %180 = vst [vmem:[%s147 + $0x18] sm:$0xff] %v176
        %s181 = sand.u32 %s66, 1
        %s182 = scalar_lea.sflag [#allocation4], %s181
        %s183 = sand.u32 %s66, 1
        %s184 = smul.addr %s183, 32
        %s185 = scalar_lea.vmem [#allocation5], %s184
        // Predicated region
        $region33: #{tpu_custom_call.1} parent=23 // pred_check
          %p186 = pneg %p76
        $region34: #{tpu_custom_call.1} parent=23 // pred_check_branch
          %188 = sbr.rel (%p186) target = $region36
        $region35: #{tpu_custom_call.1} parent=23 // pred_region
          %s190 = ssub.s32 512, 512
          %191 = vsyncadd %s182, %s190
          %s192 = smul.addr %s22, 4
          %s193 = smul.addr %s192, 128
          %s194 = scalar_lea.hbm %s1, %s193
          %s196 = sshll.u32 %s185, 4
          %s197 = int_to_ptr.vmem [resolvable:$true] %s196
          %199 = dma.vmem_to_hbm [thread:$0]  %s197, 512, %s194, %s182
        $region36: #{tpu_custom_call.1} parent=23 // pred_fallthru
          _
      $region24: #{tpu_custom_call.1} parent=5 // pred_fallthru
        _
      %p200 = scmp.le.s32.totalorder 2, %s13
      // Predicated region
      $region37: #{tpu_custom_call.1} parent=5 // pred_check
        %p201 = pneg %p200
      $region38: #{tpu_custom_call.1} parent=5 // pred_check_branch
        %203 = sbr.rel (%p201) target = $region40
      $region39: #{tpu_custom_call.1} parent=5 // pred_region
        %s204 = ssub.s32 %s13, 2
        // Predicated region
        $region41: #{tpu_custom_call.1} parent=39 // pred_check
          %p205 = pneg %p82
        $region42: #{tpu_custom_call.1} parent=39 // pred_check_branch
          %207 = sbr.rel (%p205) target = $region44
        $region43: #{tpu_custom_call.1} parent=39 // pred_region
          %s208 = sand.u32 %s67, 1
          %s209 = scalar_lea.sflag [#allocation4], %s208
          %s210 = sand.u32 %s67, 1
          %s211 = smul.addr %s210, 32
          %s212 = scalar_lea.vmem [#allocation5], %s211
          %213 = dma.done %s209, 512
        $region44: #{tpu_custom_call.1} parent=39 // pred_fallthru
          _
      $region40: #{tpu_custom_call.1} parent=5 // pred_fallthru
        _
    $region6: #{tpu_custom_call.1} parent=1 // loop_footer
      %s17 = sadd.s32 1, %s13
    $region7: #{tpu_custom_call.1} parent=1 // loop_footer_branch
      %12 = sbr.rel target = $region3
    $region8: #{tpu_custom_call.1} parent=1 // loop_exit
      _
    %214 = vsyncpa [#allocation3], 1
    %s215 = scalar_lea.sflag [#allocation3], 1
    %216 = vsyncpa %s215, 1
    %217 = vsyncpa [#allocation4], 1
    %s218 = scalar_lea.sflag [#allocation4], 1
    %219 = vsyncpa %s218, 1

</llo_original>
